<compile_context>
chip_gen: v7x
topology: tpu7x:2x2x1
jax: 0.10.0
libtpu: 0.0.40
codegen_flags: <defaults>
</compile_context>

<pallas_src>
import functools

import jax
import jax.numpy as jnp
from jax import lax
from jax.experimental import pallas as pl
from jax.experimental.pallas import tpu as pltpu


# ---------------------------------------------------------------------------
# Kernels
# ---------------------------------------------------------------------------
def _fused_s1_kernel(x_ref, w_ref, b_ref, o_ref):
    """S == 1 fast path: out = x @ W_fold + b_fold (one MXU push per block).

    x_ref : (tm, D)   rows = B*S, lane-dense
    w_ref : (D, D)    pre-folded  Wv_blockdiag^T @ Wc^T
    b_ref : (1, D)    pre-folded  bv_cat @ Wc^T + bc
    o_ref : (tm, D)
    """
    o_ref[...] = (
        jnp.dot(x_ref[...], w_ref[...], preferred_element_type=jnp.float32)
        + b_ref[...]
    ).astype(o_ref.dtype)


def _attn_kernel(x_ref, wqkv_ref, bqkv_ref, wc_ref, bc_ref, o_ref, *,
                 heads, dh, scale, batch_tile):
    """General-S path. One grid step covers `batch_tile` batch elements.

    x_ref    : (bt, S, D)   lane-dense input (no head-major transpose)
    wqkv_ref : (D, 3D)      block-diagonal [Wq^T | Wk^T | Wv^T] packed along lanes
    bqkv_ref : (1, 3D)
    wc_ref   : (D, D)       Wc^T
    bc_ref   : (1, D)
    o_ref    : (bt, S, D)
    """
    D = heads * dh
    wqkv = wqkv_ref[...]
    bqkv = bqkv_ref[...]
    wc = wc_ref[...]
    bc = bc_ref[...]

    for b in range(batch_tile):                      # static; B folded into the block
        xb = x_ref[b]                                # (S, D)
        # Fused per-head Q/K/V projection: 1 matmul instead of 3*heads tiny ones.
        qkv = jnp.dot(xb, wqkv, preferred_element_type=jnp.float32) + bqkv   # (S, 3D)
        acc = None
        for i in range(heads):                       # static head loop
            qi = qkv[:, i * dh:(i + 1) * dh]
            ki = qkv[:, D + i * dh:D + (i + 1) * dh]
            vi = qkv[:, 2 * D + i * dh:2 * D + (i + 1) * dh]
            # q @ k^T via dot_general (contract on k's dh axis; no XLU transpose).
            s = lax.dot_general(qi, ki, (((1,), (1,)), ((), ())),
                                preferred_element_type=jnp.float32) * scale   # (S, S)
            m = jnp.max(s, axis=-1, keepdims=True)
            p = jnp.exp(s - m)
            p = p * pl.reciprocal(jnp.sum(p, axis=-1, keepdims=True), approx=True)
            att = jnp.dot(p, vi, preferred_element_type=jnp.float32)          # (S, dh)
            # concat-over-heads @ Wc^T  ==  sum_i att_i @ Wc^T[i*dh:(i+1)*dh, :]
            contrib = jnp.dot(att, wc[i * dh:(i + 1) * dh, :],
                              preferred_element_type=jnp.float32)             # (S, D)
            acc = contrib if acc is None else acc + contrib
        o_ref[b] = (acc + bc).astype(o_ref.dtype)


# ---------------------------------------------------------------------------
# Wrapper
# ---------------------------------------------------------------------------
def _block_diag_t(w):
    """(H, dh, dh) per-head torch-Linear weights -> (H*dh, H*dh) block-diag of W_i^T."""
    H, dh, _ = w.shape
    eye = jnp.eye(H, dtype=w.dtype)
    wt = jnp.swapaxes(w, 1, 2)                       # per-head transpose
    return jnp.einsum("ij,iab->iajb", eye, wt).reshape(H * dh, H * dh)


def transformer_encoder_pallas(x, params, *, heads, dh):
    """x: (B, S, D) with D == heads * dh. Returns (B, S, D), matching the torch forward."""
    B, S, D = x.shape
    assert D == heads * dh

    if S == 1:
        # ---- S == 1 fast path: softmax over a single key is the identity, so
        #      att_i == v_i and the whole forward folds into one matmul + bias.
        wv_bd = _block_diag_t(params["wv"])                                   # (D, D)
        w_fold = wv_bd @ params["wc"].T                                       # (D, D)
        b_fold = (params["bv"].reshape(-1) @ params["wc"].T
                  + params["bc"]).reshape(1, D)                               # (1, D)

        x2 = x.reshape(B * S, D)       # free collapse of leading dims; no transpose
        rows = B * S
        tm = rows if rows <= 1024 else 1024          # collapse grid; tile only if huge

        out = pl.pallas_call(
            _fused_s1_kernel,
            out_shape=jax.ShapeDtypeStruct((rows, D), x.dtype),
            grid_spec=pltpu.PrefetchScalarGridSpec(
                num_scalar_prefetch=0,
                grid=(pl.cdiv(rows, tm),),
                in_specs=[
                    pl.BlockSpec((tm, D), lambda r: (r, 0)),
                    pl.BlockSpec((D, D), lambda r: (0, 0)),    # constant across grid
                    pl.BlockSpec((1, D), lambda r: (0, 0)),
                ],
                out_specs=pl.BlockSpec((tm, D), lambda r: (r, 0)),
            ),
            compiler_params=pltpu.CompilerParams(
                dimension_semantics=("parallel",)),
        )(x2, w_fold, b_fold)
        return out.reshape(B, S, D)

    # ---- general-S path (the torch module itself cannot produce S > 1, but the
    #      kernel keeps the full attention semantics).
    wqkv = jnp.concatenate([_block_diag_t(params["wq"]),
                            _block_diag_t(params["wk"]),
                            _block_diag_t(params["wv"])], axis=1)             # (D, 3D)
    bqkv = jnp.concatenate([params["bq"].reshape(-1),
                            params["bk"].reshape(-1),
                            params["bv"].reshape(-1)]).reshape(1, 3 * D)      # (1, 3D)
    wc_t = params["wc"].T                                                     # (D, D)
    bc = params["bc"].reshape(1, D)

    bt = B if B <= 8 else 8          # fold up to 8 batch elements per grid step
    kernel = functools.partial(_attn_kernel, heads=heads, dh=dh,
                               scale=dh ** -0.5, batch_tile=bt)
    return pl.pallas_call(
        kernel,
        out_shape=jax.ShapeDtypeStruct((B, S, D), x.dtype),
        grid_spec=pltpu.PrefetchScalarGridSpec(
            num_scalar_prefetch=0,
            grid=(pl.cdiv(B, bt),),
            in_specs=[
                pl.BlockSpec((bt, S, D), lambda b: (b, 0, 0)),
                pl.BlockSpec((D, 3 * D), lambda b: (0, 0)),
                pl.BlockSpec((1, 3 * D), lambda b: (0, 0)),
                pl.BlockSpec((D, D), lambda b: (0, 0)),
                pl.BlockSpec((1, D), lambda b: (0, 0)),
            ],
            out_specs=pl.BlockSpec((bt, S, D), lambda b: (b, 0, 0)),
        ),
        compiler_params=pltpu.CompilerParams(
            dimension_semantics=("parallel",)),
    )(x, wqkv, bqkv, wc_t, bc)


# ---------------------------------------------------------------------------
# Plain-JAX reference mirroring the torch forward exactly
# ---------------------------------------------------------------------------
def transformer_encoder_ref(x, params, *, heads, dh):
    scale = dh ** -0.5
    outs = []
    for i in range(heads):
        xs = x[:, :, i * dh:(i + 1) * dh]
        q = xs @ params["wq"][i].T + params["bq"][i]
        k = xs @ params["wk"][i].T + params["bk"][i]
        v = xs @ params["wv"][i].T + params["bv"][i]
        s = jnp.einsum("bsd,btd->bst", q, k) * scale
        p = jax.nn.softmax(s, axis=-1)
        outs.append(jnp.einsum("bst,btd->bsd", p, v))
    concat = jnp.concatenate(outs, axis=-1)
    return concat @ params["wc"].T + params["bc"]


def init_params(key, *, heads, dh, d_model):
    """Deterministic synthetic init (torch-Linear-style uniform bounds)."""
    ks = jax.random.split(key, 8)
    bnd_h = 1.0 / (dh ** 0.5)
    bnd_c = 1.0 / (d_model ** 0.5)
    u = lambda k, shape, b: jax.random.uniform(k, shape, jnp.float32, -b, b)
    return {
        "wq": u(ks[0], (heads, dh, dh), bnd_h), "bq": u(ks[1], (heads, dh), bnd_h),
        "wk": u(ks[2], (heads, dh, dh), bnd_h), "bk": u(ks[3], (heads, dh), bnd_h),
        "wv": u(ks[4], (heads, dh, dh), bnd_h), "bv": u(ks[5], (heads, dh), bnd_h),
        "wc": u(ks[6], (d_model, d_model), bnd_c), "bc": u(ks[7], (d_model,), bnd_c),
    }


if __name__ == "__main__":
    # Module hyperparameters (small): batches(=heads)=4, each_batch_dim=8
    # -> input_data_dim = 32.  feed_forward_hidden_dim is unused in forward().
    heads, dh = 4, 8
    d_model = heads * dh
    B, S = 2, 1          # torch's cat with a (B,1,dh) zero tensor requires S == 1

    key = jax.random.PRNGKey(0)
    kx, kp, kx2 = jax.random.split(key, 3)
    params = init_params(kp, heads=heads, dh=dh, d_model=d_model)

    # --- module-consistent shape (S == 1): fully-folded single-matmul fast path
    x = jax.random.normal(kx, (B, S, d_model), dtype=jnp.float32)
    out = jax.block_until_ready(
        transformer_encoder_pallas(x, params, heads=heads, dh=dh))
    ref = transformer_encoder_ref(x, params, heads=heads, dh=dh)
    assert out.shape == (B, S, d_model)
    assert jnp.allclose(out, ref, atol=1e-4, rtol=1e-4), \
        f"S=1 max err {jnp.max(jnp.abs(out - ref))}"

    # --- general-S path (exercises the fused-QKV attention kernel; approx
    #     reciprocal in the softmax -> slightly looser tolerance)
    S2 = 4
    x2 = jax.random.normal(kx2, (B, S2, d_model), dtype=jnp.float32)
    out2 = jax.block_until_ready(
        transformer_encoder_pallas(x2, params, heads=heads, dh=dh))
    ref2 = transformer_encoder_ref(x2, params, heads=heads, dh=dh)
    assert jnp.allclose(out2, ref2, atol=5e-3, rtol=5e-3), \
        f"S>1 max err {jnp.max(jnp.abs(out2 - ref2))}"

    print("KERNEL_OK")
</pallas_src>

<mosaic_0001>
module attributes {stable_mosaic.version = 11 : i64} {
  func.func @_fused_s1_kernel(%arg0: i32, %arg1: memref<2x32xf32, #tpu.memory_space<vmem>>, %arg2: memref<32x32xf32, #tpu.memory_space<vmem>>, %arg3: memref<1x32xf32, #tpu.memory_space<vmem>>, %arg4: memref<2x32xf32, #tpu.memory_space<vmem>>) attributes {dimension_semantics = [#tpu.dimension_semantics<parallel>], iteration_bounds = array<i64: 1>, scalar_prefetch = 0 : i64, scratch_operands = 0 : i64, tpu.core_type = #tpu.core_type<tc>, window_params = [{transform_indices = @transform_0, window_bounds = array<i64: 2, 32>}, {pipeline_mode = #tpu.pipeline_mode<synchronous>, transform_indices = @transform_1, window_bounds = array<i64: 32, 32>}, {pipeline_mode = #tpu.pipeline_mode<synchronous>, transform_indices = @transform_2, window_bounds = array<i64: 1, 32>}, {transform_indices = @transform_3, window_bounds = array<i64: 2, 32>}]} {
    %c0 = arith.constant 0 : index
    %c0_0 = arith.constant 0 : index
    %0 = vector.load %arg1[%c0, %c0_0] : memref<2x32xf32, #tpu.memory_space<vmem>>, vector<2x32xf32>
    %c0_1 = arith.constant 0 : index
    %c0_2 = arith.constant 0 : index
    %1 = vector.load %arg2[%c0_1, %c0_2] : memref<32x32xf32, #tpu.memory_space<vmem>>, vector<32x32xf32>
    %cst = arith.constant dense<0.000000e+00> : vector<2x32xf32>
    %2 = tpu.matmul %0, %1, %cst {dimension_numbers = #tpu.dot_dimension_numbers<[1], [0], [0], [1], [0, 0, 1, 1], [], []>} : vector<2x32xf32>, vector<32x32xf32>, vector<2x32xf32> -> vector<2x32xf32>
    %c0_3 = arith.constant 0 : index
    %c0_4 = arith.constant 0 : index
    %3 = vector.load %arg3[%c0_3, %c0_4] : memref<1x32xf32, #tpu.memory_space<vmem>>, vector<1x32xf32>
    %4 = vector.broadcast %3 : vector<1x32xf32> to vector<2x32xf32>
    %5 = arith.addf %2, %4 : vector<2x32xf32>
    %c0_5 = arith.constant 0 : index
    %c0_6 = arith.constant 0 : index
    %6 = vector.load %arg4[%c0_5, %c0_6] : memref<2x32xf32, #tpu.memory_space<vmem>>, vector<2x32xf32>
    tpu.vector_store %arg4[%c0_5, %c0_6], %5 {strides = array<i32>} : memref<2x32xf32, #tpu.memory_space<vmem>>, vector<2x32xf32>,
    return
  }
  func.func @transform_0(%arg0: i32) -> (i32, i32) {
    %c0_i32 = arith.constant 0 : i32
    %c0_i32_0 = arith.constant 0 : i32
    return %arg0, %c0_i32 : i32, i32
  }
  func.func @transform_1(%arg0: i32) -> (i32, i32) {
    %c0_i32 = arith.constant 0 : i32
    %c0_i32_0 = arith.constant 0 : i32
    %c0_i32_1 = arith.constant 0 : i32
    return %c0_i32, %c0_i32_0 : i32, i32
  }
  func.func @transform_2(%arg0: i32) -> (i32, i32) {
    %c0_i32 = arith.constant 0 : i32
    %c0_i32_0 = arith.constant 0 : i32
    %c0_i32_1 = arith.constant 0 : i32
    return %c0_i32, %c0_i32_0 : i32, i32
  }
  func.func @transform_3(%arg0: i32) -> (i32, i32) {
    %c0_i32 = arith.constant 0 : i32
    %c0_i32_0 = arith.constant 0 : i32
    return %arg0, %c0_i32 : i32, i32
  }
}

</mosaic_0001>

<llo_original>
// kernel: tpu_custom_call.1
$region0: #{tpu_custom_call.1}
  #allocation0 [shape = 'u32[]', space=smem, size = 0x4, offset = 0x4, fixed_abs, tag = 'smem constant byte address 0x4 - core index']
  #allocation1 [shape = 'u32[144,128]{1,0:T(1,128)}', space=vmem, size = 0x12000, scoped, tag = 'internal scratch']
  %s0 = inlined_call_operand.hbm [shape: f32[2,32], index: 0, kind: input, shape index: {}]
  %s1 = inlined_call_operand.hbm [shape: f32[32,32], index: 1, kind: input, shape index: {}]
  %s2 = inlined_call_operand.vmem [shape: f32[1,32], index: 2, kind: input, shape index: {}]
  %s3 = inlined_call_operand.hbm [shape: f32[2,32], index: 3, kind: output, shape index: {}]
  %s4 = sld [smem:[#allocation0]]
  $region30: #{tpu_custom_call.1} parent=0
    _
  %s6 = ssub.s32 1, %s4
  %s7 = scalar_select 0, %s6, %s4
  $region1: #{tpu_custom_call.1} parent=0
    #allocation2 [shape = 'u8[1024]{0}', space=vmem, size = 0x400, scoped, tag = 'input window, operand 0, single buffered']
    #allocation3 [shape = 's32[1]{0}', space=sflag, size = 0x4, scoped, tag = 'scoped memory for tpu_custom_call.1']
    #allocation4 [shape = 's32[1]{0}', space=sflag, size = 0x4, scoped, tag = 'scoped memory for tpu_custom_call.1']
    #allocation5 [shape = 'u8[16384]{0}', space=vmem, size = 0x4000, scoped, tag = 'input window, operand 1, single buffered']
    #allocation6 [shape = 's32[1]{0}', space=sflag, size = 0x4, scoped, tag = 'scoped memory for tpu_custom_call.1']
    #allocation7 [shape = 'u8[1024]{0}', space=vmem, size = 0x400, scoped, tag = 'output window, operand 0, single buffered']
    %8 = vsyncpa [#allocation3], 0
    %9 = vsyncpa [#allocation6], 0
    %10 = vsyncpa [#allocation4], 0
    // Predicated region
    $region2: #{tpu_custom_call.1} parent=1 // pred_check
      _
    $region3: #{tpu_custom_call.1} parent=1 // pred_check_branch
      %12 = sbr.rel (0) target = $region5
    $region4: #{tpu_custom_call.1} parent=1 // pred_region
      %s14 = ssub.s32 32, 32
      %15 = vsyncadd [#allocation3], %s14
      %s17 = sshll.u32 [#allocation2], 4
      %s18 = int_to_ptr.vmem [resolvable:$true] %s17
      %20 = dma.hbm_to_vmem [thread:$0]  %s0, 32, %s18, [#allocation3]
    $region5: #{tpu_custom_call.1} parent=1 // pred_fallthru
      _
    // Predicated region
    $region6: #{tpu_custom_call.1} parent=1 // pred_check
      _
    $region7: #{tpu_custom_call.1} parent=1 // pred_check_branch
      %22 = sbr.rel (0) target = $region9
    $region8: #{tpu_custom_call.1} parent=1 // pred_region
      %s24 = ssub.s32 512, 512
      %25 = vsyncadd [#allocation6], %s24
      %s26 = sshll.u32 [#allocation5], 4
      %s27 = int_to_ptr.vmem [resolvable:$true] %s26
      %32 = dma.hbm_to_vmem [thread:$0]  %s1, 512, %s27, [#allocation6], 128, 128, 8
    $region9: #{tpu_custom_call.1} parent=1 // pred_fallthru
      _
    // Predicated region
    $region10: #{tpu_custom_call.1} parent=1 // pred_check
      _
    $region11: #{tpu_custom_call.1} parent=1 // pred_check_branch
      %34 = sbr.rel (0) target = $region13
    $region12: #{tpu_custom_call.1} parent=1 // pred_region
      _
    $region13: #{tpu_custom_call.1} parent=1 // pred_fallthru
      _
    // Predicated region
    $region14: #{tpu_custom_call.1} parent=1 // pred_check
      _
    $region15: #{tpu_custom_call.1} parent=1 // pred_check_branch
      %36 = sbr.rel (0) target = $region17
    $region16: #{tpu_custom_call.1} parent=1 // pred_region
      %37 = dma.done [#allocation3], 32
    $region17: #{tpu_custom_call.1} parent=1 // pred_fallthru
      _
    // Predicated region
    $region18: #{tpu_custom_call.1} parent=1 // pred_check
      _
    $region19: #{tpu_custom_call.1} parent=1 // pred_check_branch
      %39 = sbr.rel (0) target = $region21
    $region20: #{tpu_custom_call.1} parent=1 // pred_region
      %40 = dma.done [#allocation6], 512
    $region21: #{tpu_custom_call.1} parent=1 // pred_fallthru
      _
    %v41 = vld [vmem:[#allocation2] sm:$0x3]
    %v42 = vld [vmem:[#allocation5] sm:$0xff]
    %v43 = vld [vmem:[#allocation5 + $0x8] sm:$0xff]
    %v44 = vld [vmem:[#allocation5 + $0x10] sm:$0xff]
    %v45 = vld [vmem:[#allocation5 + $0x18] sm:$0xff]
    %v46 = vld [vmem:[%s2] sm:$0x1]
    %v48 = vlaneseq
    %v49 = vshrl.u32 %v48, 7
    %v50 = vsub.s32 0, %v49
    %v51 = vrot.slane %v46, %v50
    %vm53 = vcmask 261120
    %v55 = vsel %vm53, %v41, 0
    %57 = vmatprep.subr.mxu0 0.0
    %58 = vmatpush1.msra.mxu0 %v42
    %59 = vmatprep.subr.mxu0 0.0
    %60 = vmatpush1.msra.mxu0 %v43
    %61 = vmatprep.subr.mxu0 0.0
    %62 = vmatpush1.msra.mxu0 %v44
    %63 = vmatprep.subr.mxu0 0.0
    %64 = vmatpush1.msra.mxu0 %v45
    %65 = vmatprep.subr.mxu0 0.0
    %66 = vmatpush1.msra.mxu0 0.0
    %67 = vmatprep.subr.mxu0 0.0
    %68 = vmatpush1.msra.mxu0 0.0
    %69 = vmatprep.subr.mxu0 0.0
    %70 = vmatpush1.msra.mxu0 0.0
    %71 = vmatprep.subr.mxu0 0.0
    %72 = vmatpush1.msra.mxu0 0.0
    %73 = vmatprep.subr.mxu0 0.0
    %74 = vmatpush1.msra.mxu0 0.0
    %75 = vmatprep.subr.mxu0 0.0
    %76 = vmatpush1.msra.mxu0 0.0
    %77 = vmatprep.subr.mxu0 0.0
    %78 = vmatpush1.msra.mxu0 0.0
    %79 = vmatprep.subr.mxu0 0.0
    %80 = vmatpush1.msra.mxu0 0.0
    %81 = vmatprep.subr.mxu0 0.0
    %82 = vmatpush1.msra.mxu0 0.0
    %83 = vmatprep.subr.mxu0 0.0
    %84 = vmatpush1.msra.mxu0 0.0
    %85 = vmatprep.subr.mxu0 0.0
    %86 = vmatpush1.msra.mxu0 0.0
    %87 = vmatprep.subr.mxu0 0.0
    %88 = vmatpush1.msra.mxu0 0.0
    %89 = vmatprep.subr.mxu0 0.0
    %90 = vmatpush1.msra.mxu0 0.0
    %91 = vmatprep.subr.mxu0 0.0
    %92 = vmatpush1.msra.mxu0 0.0
    %93 = vmatprep.subr.mxu0 0.0
    %94 = vmatpush1.msra.mxu0 0.0
    %95 = vmatprep.subr.mxu0 0.0
    %96 = vmatpush1.msra.mxu0 0.0
    %97 = vmatprep.subr.mxu0 0.0
    %98 = vmatpush1.msra.mxu0 0.0
    %99 = vmatprep.subr.mxu0 0.0
    %100 = vmatpush1.msra.mxu0 0.0
    %101 = vmatprep.subr.mxu0 0.0
    %102 = vmatpush1.msra.mxu0 0.0
    %103 = vmatprep.subr.mxu0 0.0
    %104 = vmatpush1.msra.mxu0 0.0
    %105 = vmatprep.subr.mxu0 0.0
    %106 = vmatpush1.msra.mxu0 0.0
    %107 = vmatprep.subr.mxu0 0.0
    %108 = vmatpush1.msra.mxu0 0.0
    %109 = vmatprep.subr.mxu0 0.0
    %110 = vmatpush1.msra.mxu0 0.0
    %111 = vmatprep.subr.mxu0 0.0
    %112 = vmatpush1.msra.mxu0 0.0
    %113 = vmatprep.subr.mxu0 0.0
    %114 = vmatpush1.msra.mxu0 0.0
    %115 = vmatprep.subr.mxu0 0.0
    %116 = vmatpush1.msra.mxu0 0.0
    %117 = vmatprep.subr.mxu0 0.0
    %118 = vmatpush1.msra.mxu0 0.0
    %119 = vmatprep.subr.mxu0 0.0
    %120 = vmatpush1.msra.mxu0 0.0
    %121 = vmatprep.mubr.f32.mxu0 0.0
    %122 = vmatmul.mubr.f32.gmra.mrb[0].mxu0 %v55
    %v123 = vpop.f32.mrb[0].mxu0
    %v124 = vadd.f32 %v51, %v123
    %v125 = vpop.f32.mrb[0].mxu0
    %126 = vdwg.mxu0
    %vm127 = vcmask 254976
    %128 = vst.msk [vmem:[#allocation7] sm:$0x3] %vm127, %v124
    // Predicated region
    $region22: #{tpu_custom_call.1} parent=1 // pred_check
      _
    $region23: #{tpu_custom_call.1} parent=1 // pred_check_branch
      %130 = sbr.rel (0) target = $region25
    $region24: #{tpu_custom_call.1} parent=1 // pred_region
      %s132 = ssub.s32 32, 32
      %133 = vsyncadd [#allocation4], %s132
      %s135 = sshll.u32 [#allocation7], 4
      %s136 = int_to_ptr.vmem [resolvable:$true] %s135
      %138 = dma.vmem_to_hbm [thread:$0]  %s136, 32, %s3, [#allocation4]
    $region25: #{tpu_custom_call.1} parent=1 // pred_fallthru
      _
    // Predicated region
    $region26: #{tpu_custom_call.1} parent=1 // pred_check
      _
    $region27: #{tpu_custom_call.1} parent=1 // pred_check_branch
      %140 = sbr.rel (0) target = $region29
    $region28: #{tpu_custom_call.1} parent=1 // pred_region
      %141 = dma.done [#allocation4], 32
    $region29: #{tpu_custom_call.1} parent=1 // pred_fallthru
      _
    %142 = vsyncpa [#allocation3], 1
    %143 = vsyncpa [#allocation6], 1
    %144 = vsyncpa [#allocation4], 1

</llo_original>
